<compile_context>
chip_gen: v6e
topology: v6e:2x2x1
jax: 0.10.0
libtpu: 0.0.40
codegen_flags: <defaults>
</compile_context>

<pallas_src>
import functools

import jax
import jax.numpy as jnp
from jax.experimental import pallas as pl
from jax.experimental.pallas import tpu as pltpu


# -----------------------------------------------------------------------------
# Kernel 1: fused causal dilated Conv1d + BatchNorm1d (folded affine) + ReLU.
# (Conv1d(padding=p) followed by Chomp1d(p) == causal conv; chomp is fused.)
# -----------------------------------------------------------------------------
def _conv_bn_relu_kernel(xp_ref, w_ref, scale_ref, shift_ref, o_ref, *, dilation):
    # xp_ref:    (1, Cin, T + pad)  left-padded input, one batch element
    # w_ref:     (K, Cout, Cin)     one (Cout, Cin) matrix per conv tap
    # scale_ref: (Cout, 1)          gamma / sqrt(var + eps)
    # shift_ref: (Cout, 1)          beta + scale * (conv_bias - mean)
    # o_ref:     (1, Cout, T)
    t_out = o_ref.shape[-1]
    cout = o_ref.shape[1]
    k = w_ref.shape[0]

    xp = xp_ref[0].astype(jnp.float32)                       # (Cin, T + pad)
    acc = jnp.zeros((cout, t_out), jnp.float32)
    for j in range(k):                                        # static, k is tiny
        start = j * dilation
        acc = acc + jnp.dot(
            w_ref[j].astype(jnp.float32),
            xp[:, start:start + t_out],
            preferred_element_type=jnp.float32,
        )
    y = acc * scale_ref[...] + shift_ref[...]
    o_ref[0] = jnp.maximum(y, 0.0).astype(o_ref.dtype)


def causal_conv_bn_relu(x, w, b, gamma, beta, mean, var, *, dilation, eps=1e-5):
    """x: (N, Cin, T), w: (Cout, Cin, K) -> (N, Cout, T)."""
    n, cin, t = x.shape
    cout, _, k = w.shape
    pad = (k - 1) * dilation

    x_pad = jnp.pad(x, ((0, 0), (0, 0), (pad, 0)))            # causal left pad
    w_taps = jnp.transpose(w, (2, 0, 1)).astype(jnp.float32)  # (K, Cout, Cin)
    scale = (gamma / jnp.sqrt(var + eps)).astype(jnp.float32)
    shift = (beta + scale * (b - mean)).astype(jnp.float32)
    scale2 = scale.reshape(cout, 1)
    shift2 = shift.reshape(cout, 1)

    kernel = functools.partial(_conv_bn_relu_kernel, dilation=dilation)
    return pl.pallas_call(
        kernel,
        out_shape=jax.ShapeDtypeStruct((n, cout, t), x.dtype),
        grid=(n,),
        in_specs=[
            pl.BlockSpec((1, cin, t + pad), lambda i: (i, 0, 0)),
            pl.BlockSpec((k, cout, cin), lambda i: (0, 0, 0)),
            pl.BlockSpec((cout, 1), lambda i: (0, 0)),
            pl.BlockSpec((cout, 1), lambda i: (0, 0)),
        ],
        out_specs=pl.BlockSpec((1, cout, t), lambda i: (i, 0, 0)),
        compiler_params=pltpu.CompilerParams(dimension_semantics=("parallel",)),
    )(x_pad, w_taps, scale2, shift2)


# -----------------------------------------------------------------------------
# Kernel 2: SelfAttention.
#   score[b, t] = tanh(sum_c h[b, t, c] * w[t, c] + bias[t])
#   out[b, c]   = sum_t score[b, t] * h[b, t, c]
# Consumes h in channels-major (B, C, T) layout (conv output as-is, no permute).
# -----------------------------------------------------------------------------
def _self_attn_kernel(h_ref, w_ref, b_ref, o_ref):
    # h_ref: (1, C, T); w_ref: (C, T); b_ref: (1, T); o_ref: (1, 1, C)
    h = h_ref[0].astype(jnp.float32)                          # (C, T)
    w = w_ref[...].astype(jnp.float32)                        # (C, T)
    bias = b_ref[...].astype(jnp.float32)                     # (1, T)
    score = jnp.tanh(jnp.sum(h * w, axis=0, keepdims=True) + bias)  # (1, T)
    out = jax.lax.dot_general(                                # (1, T) x (C, T) -> (1, C)
        score, h, (((1,), (1,)), ((), ())), preferred_element_type=jnp.float32)
    o_ref[0] = out.astype(o_ref.dtype)


def self_attention(h_ct, w_ct, bias_t):
    """h_ct: (B, C, T); w_ct: (C, T); bias_t: (1, T) -> (B, C)."""
    bsz, c, t = h_ct.shape
    out = pl.pallas_call(
        _self_attn_kernel,
        out_shape=jax.ShapeDtypeStruct((bsz, 1, c), h_ct.dtype),
        grid=(bsz,),
        in_specs=[
            pl.BlockSpec((1, c, t), lambda i: (i, 0, 0)),
            pl.BlockSpec((c, t), lambda i: (0, 0)),
            pl.BlockSpec((1, t), lambda i: (0, 0)),
        ],
        out_specs=pl.BlockSpec((1, 1, c), lambda i: (i, 0, 0)),
        compiler_params=pltpu.CompilerParams(dimension_semantics=("parallel",)),
    )(h_ct, w_ct, bias_t)
    return out[:, 0, :]


# -----------------------------------------------------------------------------
# Full model forward.
# -----------------------------------------------------------------------------
def network_out_forward(x, params):
    """x: (B, T, D) as in NetworkOutModel.forward; returns (B, out_dim)."""
    h = jnp.transpose(x, (0, 2, 1))                           # x.permute(0, 2, 1) -> (B, D, T)
    for lp in params["layers"]:
        h = causal_conv_bn_relu(
            h, lp["w"], lp["b"], lp["gamma"], lp["beta"], lp["mean"], lp["var"],
            dilation=lp["dilation"])
    # h is (B, C_last, T); attention takes it directly (final permute fused away).
    return self_attention(h, params["attn_w_ct"], params["attn_bias_t"])


# -----------------------------------------------------------------------------
# Pure-JAX reference (mirrors the PyTorch module op-by-op).
# -----------------------------------------------------------------------------
def _reference_forward(x, params, eps=1e-5):
    h = jnp.transpose(x, (0, 2, 1))
    for lp in params["layers"]:
        w, b, d = lp["w"], lp["b"], lp["dilation"]
        k = w.shape[-1]
        pad = (k - 1) * d
        y = jax.lax.conv_general_dilated(
            h, w, window_strides=(1,), padding=[(pad, pad)],
            rhs_dilation=(d,), dimension_numbers=("NCH", "OIH", "NCH"))
        y = y + b[None, :, None]
        y = (y - lp["mean"][None, :, None]) / jnp.sqrt(lp["var"] + eps)[None, :, None]
        y = y * lp["gamma"][None, :, None] + lp["beta"][None, :, None]
        y = jnp.maximum(y, 0.0)
        h = y[:, :, :-pad]                                    # Chomp1d(pad)
    hs = jnp.transpose(h, (0, 2, 1))                          # (B, T, C)
    w_attn = params["attn_w_ct"].T                            # (T, C)
    bias = params["attn_bias_t"][0]                           # (T,)
    score = jnp.tanh(jnp.einsum("btc,tc->bt", hs, w_attn) + bias[None, :])
    return jnp.einsum("bt,btc->bc", score, hs)


if __name__ == "__main__":
    key = jax.random.PRNGKey(0)
    B, T, D = 2, 16, 8                 # batch, chunk_length (=seq), input_dim
    hiddens = (16, 32)
    ksizes = (3, 3)
    dilation_base = 3

    keys = jax.random.split(key, 2 * len(hiddens) + 2)
    layers = []
    cin = D
    for i, (cout, k) in enumerate(zip(hiddens, ksizes)):
        layers.append(dict(
            w=0.2 * jax.random.normal(keys[2 * i], (cout, cin, k), dtype=jnp.float32),
            b=0.2 * jax.random.normal(keys[2 * i + 1], (cout,), dtype=jnp.float32),
            gamma=jnp.ones((cout,), jnp.float32),
            beta=jnp.zeros((cout,), jnp.float32),
            mean=jnp.zeros((cout,), jnp.float32),   # BatchNorm running stats (fresh module)
            var=jnp.ones((cout,), jnp.float32),
            dilation=dilation_base ** i,
        ))
        cin = cout
    # TODO(synk): training-mode BatchNorm (per-batch statistics) is not implemented;
    # the kernel folds inference-style (running-stat) BN into a per-channel affine.

    attn_w_ct = 0.2 * jax.random.normal(keys[-2], (hiddens[-1], T), dtype=jnp.float32)  # (C, T)
    attn_bias_t = jnp.zeros((1, T), jnp.float32)   # PyTorch fills atten_bias with 0
    params = dict(layers=layers, attn_w_ct=attn_w_ct, attn_bias_t=attn_bias_t)

    x = jax.random.normal(keys[-1], (B, T, D), dtype=jnp.float32)

    y = network_out_forward(x, params)
    y = jax.block_until_ready(y)

    ref = _reference_forward(x, params)
    assert y.shape == (B, hiddens[-1]), y.shape
    assert jnp.allclose(y, ref, atol=1e-4, rtol=1e-4), float(jnp.max(jnp.abs(y - ref)))

    print("KERNEL_OK")
</pallas_src>

<mosaic_0001>
module attributes {stable_mosaic.version = 11 : i64} {
  func.func @_conv_bn_relu_kernel(%arg0: i32, %arg1: memref<1x8x18xf32, #tpu.memory_space<vmem>>, %arg2: memref<3x16x8xf32, #tpu.memory_space<vmem>>, %arg3: memref<16x1xf32, #tpu.memory_space<vmem>>, %arg4: memref<16x1xf32, #tpu.memory_space<vmem>>, %arg5: memref<1x16x16xf32, #tpu.memory_space<vmem>>) attributes {dimension_semantics = [#tpu.dimension_semantics<parallel>], iteration_bounds = array<i64: 2>, scalar_prefetch = 0 : i64, scratch_operands = 0 : i64, tpu.core_type = #tpu.core_type<tc>, window_params = [{transform_indices = @transform_0, window_bounds = array<i64: 1, 8, 18>}, {pipeline_mode = #tpu.pipeline_mode<synchronous>, transform_indices = @transform_1, window_bounds = array<i64: 3, 16, 8>}, {pipeline_mode = #tpu.pipeline_mode<synchronous>, transform_indices = @transform_2, window_bounds = array<i64: 16, 1>}, {pipeline_mode = #tpu.pipeline_mode<synchronous>, transform_indices = @transform_3, window_bounds = array<i64: 16, 1>}, {transform_indices = @transform_4, window_bounds = array<i64: 1, 16, 16>}]} {
    %c0 = arith.constant 0 : index
    %c0_0 = arith.constant 0 : index
    %c0_1 = arith.constant 0 : index
    %0 = vector.load %arg1[%c0, %c0_0, %c0_1] : memref<1x8x18xf32, #tpu.memory_space<vmem>>, vector<1x8x18xf32>
    %1 = vector.shape_cast %0 : vector<1x8x18xf32> to vector<8x18xf32>
    %cst = arith.constant 0.000000e+00 : f32
    %2 = vector.broadcast %cst : f32 to vector<16x16xf32>
    %c0_2 = arith.constant 0 : index
    %c0_3 = arith.constant 0 : index
    %c0_4 = arith.constant 0 : index
    %3 = vector.load %arg2[%c0_2, %c0_3, %c0_4] : memref<3x16x8xf32, #tpu.memory_space<vmem>>, vector<1x16x8xf32>
    %4 = vector.shape_cast %3 : vector<1x16x8xf32> to vector<16x8xf32>
    %5 = vector.extract_strided_slice %1 {offsets = [0, 0], sizes = [8, 16], strides = [1, 1]} : vector<8x18xf32> to vector<8x16xf32>
    %cst_5 = arith.constant dense<0.000000e+00> : vector<16x16xf32>
    %6 = tpu.matmul %4, %5, %cst_5 {dimension_numbers = #tpu.dot_dimension_numbers<[1], [0], [0], [1], [0, 0, 1, 1], [], []>} : vector<16x8xf32>, vector<8x16xf32>, vector<16x16xf32> -> vector<16x16xf32>
    %7 = arith.addf %2, %6 : vector<16x16xf32>
    %c1 = arith.constant 1 : index
    %c0_6 = arith.constant 0 : index
    %c0_7 = arith.constant 0 : index
    %8 = vector.load %arg2[%c1, %c0_6, %c0_7] : memref<3x16x8xf32, #tpu.memory_space<vmem>>, vector<1x16x8xf32>
    %9 = vector.shape_cast %8 : vector<1x16x8xf32> to vector<16x8xf32>
    %10 = vector.extract_strided_slice %1 {offsets = [0, 1], sizes = [8, 16], strides = [1, 1]} : vector<8x18xf32> to vector<8x16xf32>
    %cst_8 = arith.constant dense<0.000000e+00> : vector<16x16xf32>
    %11 = tpu.matmul %9, %10, %cst_8 {dimension_numbers = #tpu.dot_dimension_numbers<[1], [0], [0], [1], [0, 0, 1, 1], [], []>} : vector<16x8xf32>, vector<8x16xf32>, vector<16x16xf32> -> vector<16x16xf32>
    %12 = arith.addf %7, %11 : vector<16x16xf32>
    %c2 = arith.constant 2 : index
    %c0_9 = arith.constant 0 : index
    %c0_10 = arith.constant 0 : index
    %13 = vector.load %arg2[%c2, %c0_9, %c0_10] : memref<3x16x8xf32, #tpu.memory_space<vmem>>, vector<1x16x8xf32>
    %14 = vector.shape_cast %13 : vector<1x16x8xf32> to vector<16x8xf32>
    %15 = vector.extract_strided_slice %1 {offsets = [0, 2], sizes = [8, 16], strides = [1, 1]} : vector<8x18xf32> to vector<8x16xf32>
    %cst_11 = arith.constant dense<0.000000e+00> : vector<16x16xf32>
    %16 = tpu.matmul %14, %15, %cst_11 {dimension_numbers = #tpu.dot_dimension_numbers<[1], [0], [0], [1], [0, 0, 1, 1], [], []>} : vector<16x8xf32>, vector<8x16xf32>, vector<16x16xf32> -> vector<16x16xf32>
    %17 = arith.addf %12, %16 : vector<16x16xf32>
    %c0_12 = arith.constant 0 : index
    %c0_13 = arith.constant 0 : index
    %18 = vector.load %arg3[%c0_12, %c0_13] : memref<16x1xf32, #tpu.memory_space<vmem>>, vector<16x1xf32>
    %19 = vector.broadcast %18 : vector<16x1xf32> to vector<16x16xf32>
    %20 = arith.mulf %17, %19 : vector<16x16xf32>
    %c0_14 = arith.constant 0 : index
    %c0_15 = arith.constant 0 : index
    %21 = vector.load %arg4[%c0_14, %c0_15] : memref<16x1xf32, #tpu.memory_space<vmem>>, vector<16x1xf32>
    %22 = vector.broadcast %21 : vector<16x1xf32> to vector<16x16xf32>
    %23 = arith.addf %20, %22 : vector<16x16xf32>
    %cst_16 = arith.constant 0.000000e+00 : f32
    %24 = vector.broadcast %cst_16 : f32 to vector<16x16xf32>
    %25 = arith.maximumf %23, %24 : vector<16x16xf32>
    %c0_17 = arith.constant 0 : index
    %c0_18 = arith.constant 0 : index
    %c0_19 = arith.constant 0 : index
    %26 = vector.load %arg5[%c0_17, %c0_18, %c0_19] : memref<1x16x16xf32, #tpu.memory_space<vmem>>, vector<1x16x16xf32>
    %27 = vector.shape_cast %26 : vector<1x16x16xf32> to vector<16x16xf32>
    %28 = vector.shape_cast %25 : vector<16x16xf32> to vector<1x16x16xf32>
    tpu.vector_store %arg5[%c0_17, %c0_18, %c0_19], %28 {strides = array<i32>} : memref<1x16x16xf32, #tpu.memory_space<vmem>>, vector<1x16x16xf32>,
    return
  }
  func.func @transform_0(%arg0: i32) -> (i32, i32, i32) {
    %c0_i32 = arith.constant 0 : i32
    %c0_i32_0 = arith.constant 0 : i32
    %c0_i32_1 = arith.constant 0 : i32
    return %arg0, %c0_i32, %c0_i32_0 : i32, i32, i32
  }
  func.func @transform_1(%arg0: i32) -> (i32, i32, i32) {
    %c0_i32 = arith.constant 0 : i32
    %c0_i32_0 = arith.constant 0 : i32
    %c0_i32_1 = arith.constant 0 : i32
    %c0_i32_2 = arith.constant 0 : i32
    return %c0_i32, %c0_i32_0, %c0_i32_1 : i32, i32, i32
  }
  func.func @transform_2(%arg0: i32) -> (i32, i32) {
    %c0_i32 = arith.constant 0 : i32
    %c0_i32_0 = arith.constant 0 : i32
    %c0_i32_1 = arith.constant 0 : i32
    return %c0_i32, %c0_i32_0 : i32, i32
  }
  func.func @transform_3(%arg0: i32) -> (i32, i32) {
    %c0_i32 = arith.constant 0 : i32
    %c0_i32_0 = arith.constant 0 : i32
    %c0_i32_1 = arith.constant 0 : i32
    return %c0_i32, %c0_i32_0 : i32, i32
  }
  func.func @transform_4(%arg0: i32) -> (i32, i32, i32) {
    %c0_i32 = arith.constant 0 : i32
    %c0_i32_0 = arith.constant 0 : i32
    %c0_i32_1 = arith.constant 0 : i32
    return %arg0, %c0_i32, %c0_i32_0 : i32, i32, i32
  }
}

</mosaic_0001>

<llo_original>
// kernel: tpu_custom_call.1
$region0: #{tpu_custom_call.1}
  #allocation0 [shape = 'u32[]', space=smem, size = 0x4, offset = 0x4, fixed_abs, tag = 'smem constant byte address 0x4 - core index']
  #allocation1 [shape = 'u32[144,128]{1,0:T(1,128)}', space=vmem, size = 0x12000, scoped, tag = 'internal scratch']
  %s0 = inlined_call_operand.vmem [shape: f32[2,8,18], index: 0, kind: input, shape index: {}]
  %s1 = inlined_call_operand.vmem [shape: f32[3,16,8], index: 1, kind: input, shape index: {}]
  %s2 = inlined_call_operand.vmem [shape: f32[16,1], index: 2, kind: input, shape index: {}]
  %s3 = inlined_call_operand.vmem [shape: f32[16,1], index: 3, kind: input, shape index: {}]
  %s4 = inlined_call_operand.hbm [shape: f32[2,16,16], index: 4, kind: output, shape index: {}]
  %s5 = sld [smem:[#allocation0]]
  $region49: #{tpu_custom_call.1} parent=0
    _
  %s7 = ssub.s32 1, %s5
  %s8 = scalar_select 0, %s7, %s5
  $region1: #{tpu_custom_call.1} parent=0
    #allocation2 [shape = 'u8[16384]{0}', space=vmem, size = 0x4000, scoped, tag = 'output window, operand 0']
    #allocation3 [shape = 's32[2]{0}', space=sflag, size = 0x8, scoped, tag = 'scoped memory for tpu_custom_call.1']
    %9 = vsyncpa [#allocation3], 0
    %s10 = scalar_lea.sflag [#allocation3], 1
    %11 = vsyncpa %s10, 0
    loop: start=0, step=1, limit=4
    $region2: #{tpu_custom_call.1} parent=1 // loop_pre_header
      _
    $region3: #{tpu_custom_call.1} parent=1 // loop_header
      %s13 = sphi 0, %s17
      %p14 = scmp.ge.s32.totalorder %s13, 4
      %s23 = sphi 0, %s25
      %s26 = sphi 0, %s23
      %s27 = sphi 0, %s26
      %s43 = sphi 0, %s27
      %s47 = sphi 0, %s47
      %s49 = sphi 0, %s47
      %s50 = sphi 0, %s49
      %s64 = sphi 0, %s50
      %s68 = sphi 0, %s68
      %s70 = sphi 0, %s68
      %s71 = sphi 0, %s70
      %s85 = sphi 0, %s71
      %s89 = sphi 0, %s89
      %s91 = sphi 0, %s89
      %s92 = sphi 0, %s91
      %s106 = sphi 0, %s92
      %s112 = sphi 0, %s114
      %s115 = sphi 0, %s112
      %s116 = sphi 0, %s115
      %s132 = sphi 0, %s116
    $region4: #{tpu_custom_call.1} parent=1 // loop_header_branch
      %16 = sbr.rel (%p14) target = $region8
    $region5: #{tpu_custom_call.1} parent=1 // loop_body
      %s18 = ssub.s32 %s13, 1
      %s19 = ssub.s32 %s13, 2
      %s20 = sadd.s32 %s13, 1
      %s21 = ssub.s32 %s13, %s20
      %p22 = scmp.eq.s32.totalorder %s21, 0
      %s24 = sadd.s32 %s23, 1
      %s25 = scalar_select %p22, %s23, %s24
      %p28 = pneg %p22
      %p29 = scmp.eq.s32.totalorder %s13, 1
      %p30 = por %p28, %p29
      %p31 = scmp.ne.s32.totalorder %s23, %s26
      %p32 = scmp.eq.s32.totalorder %s13, 0
      %p33 = por %p31, %p32
      %p34 = scmp.ne.s32.totalorder %s23, %s26
      %p35 = scmp.eq.s32.totalorder %s18, 1
      %p36 = por %p34, %p35
      %p37 = scmp.ne.s32.totalorder %s26, %s27
      %p38 = scmp.eq.s32.totalorder %s18, 0
      %p39 = por %p37, %p38
      %p40 = scmp.ne.s32.totalorder %s26, %s27
      %p41 = scmp.eq.s32.totalorder %s19, 1
      %p42 = por %p40, %p41
      %p44 = scmp.ne.s32.totalorder %s27, %s43
      %p45 = scmp.eq.s32.totalorder %s19, 0
      %p46 = por %p44, %p45
      %s48 = sadd.s32 %s47, 1
      %p51 = scmp.eq.s32.totalorder %s13, 1
      %p52 = scmp.ne.s32.totalorder %s47, %s49
      %p53 = scmp.eq.s32.totalorder %s13, 0
      %p54 = por %p52, %p53
      %p55 = scmp.ne.s32.totalorder %s47, %s49
      %p56 = scmp.eq.s32.totalorder %s18, 1
      %p57 = por %p55, %p56
      %p58 = scmp.ne.s32.totalorder %s49, %s50
      %p59 = scmp.eq.s32.totalorder %s18, 0
      %p60 = por %p58, %p59
      %p61 = scmp.ne.s32.totalorder %s49, %s50
      %p62 = scmp.eq.s32.totalorder %s19, 1
      %p63 = por %p61, %p62
      %p65 = scmp.ne.s32.totalorder %s50, %s64
      %p66 = scmp.eq.s32.totalorder %s19, 0
      %p67 = por %p65, %p66
      %s69 = sadd.s32 %s68, 1
      %p72 = scmp.eq.s32.totalorder %s13, 1
      %p73 = scmp.ne.s32.totalorder %s68, %s70
      %p74 = scmp.eq.s32.totalorder %s13, 0
      %p75 = por %p73, %p74
      %p76 = scmp.ne.s32.totalorder %s68, %s70
      %p77 = scmp.eq.s32.totalorder %s18, 1
      %p78 = por %p76, %p77
      %p79 = scmp.ne.s32.totalorder %s70, %s71
      %p80 = scmp.eq.s32.totalorder %s18, 0
      %p81 = por %p79, %p80
      %p82 = scmp.ne.s32.totalorder %s70, %s71
      %p83 = scmp.eq.s32.totalorder %s19, 1
      %p84 = por %p82, %p83
      %p86 = scmp.ne.s32.totalorder %s71, %s85
      %p87 = scmp.eq.s32.totalorder %s19, 0
      %p88 = por %p86, %p87
      %s90 = sadd.s32 %s89, 1
      %p93 = scmp.eq.s32.totalorder %s13, 1
      %p94 = scmp.ne.s32.totalorder %s89, %s91
      %p95 = scmp.eq.s32.totalorder %s13, 0
      %p96 = por %p94, %p95
      %p97 = scmp.ne.s32.totalorder %s89, %s91
      %p98 = scmp.eq.s32.totalorder %s18, 1
      %p99 = por %p97, %p98
      %p100 = scmp.ne.s32.totalorder %s91, %s92
      %p101 = scmp.eq.s32.totalorder %s18, 0
      %p102 = por %p100, %p101
      %p103 = scmp.ne.s32.totalorder %s91, %s92
      %p104 = scmp.eq.s32.totalorder %s19, 1
      %p105 = por %p103, %p104
      %p107 = scmp.ne.s32.totalorder %s92, %s106
      %p108 = scmp.eq.s32.totalorder %s19, 0
      %p109 = por %p107, %p108
      %s110 = ssub.s32 %s13, %s20
      %p111 = scmp.eq.s32.totalorder %s110, 0
      %s113 = sadd.s32 %s112, 1
      %s114 = scalar_select %p111, %s112, %s113
      %p117 = pneg %p111
      %p118 = scmp.eq.s32.totalorder %s13, 1
      %p119 = por %p117, %p118
      %p120 = scmp.ne.s32.totalorder %s112, %s115
      %p121 = scmp.eq.s32.totalorder %s13, 0
      %p122 = por %p120, %p121
      %p123 = scmp.ne.s32.totalorder %s112, %s115
      %p124 = scmp.eq.s32.totalorder %s18, 1
      %p125 = por %p123, %p124
      %p126 = scmp.ne.s32.totalorder %s115, %s116
      %p127 = scmp.eq.s32.totalorder %s18, 0
      %p128 = por %p126, %p127
      %p129 = scmp.ne.s32.totalorder %s115, %s116
      %p130 = scmp.eq.s32.totalorder %s19, 1
      %p131 = por %p129, %p130
      %p133 = scmp.ne.s32.totalorder %s116, %s132
      %p134 = scmp.eq.s32.totalorder %s19, 0
      %p135 = por %p133, %p134
      %p136 = scmp.le.s32.totalorder 1, %s13
      %p137 = scmp.lt.s32.totalorder %s13, 3
      %p138 = pnand %p136, %p137
      %p139 = pneg %p138
      // Predicated region
      $region9: #{tpu_custom_call.1} parent=5 // pred_check
        _
      $region10: #{tpu_custom_call.1} parent=5 // pred_check_branch
        %141 = sbr.rel (%p138) target = $region12
      $region11: #{tpu_custom_call.1} parent=5 // pred_region
        %s142 = ssub.s32 %s13, 1
        // Predicated region
        $region13: #{tpu_custom_call.1} parent=11 // pred_check
          %p143 = pneg %p60
        $region14: #{tpu_custom_call.1} parent=11 // pred_check_branch
          %145 = sbr.rel (%p143) target = $region16
        $region15: #{tpu_custom_call.1} parent=11 // pred_region
          _
        $region16: #{tpu_custom_call.1} parent=11 // pred_fallthru
          _
        // Predicated region
        $region17: #{tpu_custom_call.1} parent=11 // pred_check
          %p146 = pneg %p81
        $region18: #{tpu_custom_call.1} parent=11 // pred_check_branch
          %148 = sbr.rel (%p146) target = $region20
        $region19: #{tpu_custom_call.1} parent=11 // pred_region
          _
        $region20: #{tpu_custom_call.1} parent=11 // pred_fallthru
          _
        // Predicated region
        $region21: #{tpu_custom_call.1} parent=11 // pred_check
          %p149 = pneg %p102
        $region22: #{tpu_custom_call.1} parent=11 // pred_check_branch
          %151 = sbr.rel (%p149) target = $region24
        $region23: #{tpu_custom_call.1} parent=11 // pred_region
          _
        $region24: #{tpu_custom_call.1} parent=11 // pred_fallthru
          _
      $region12: #{tpu_custom_call.1} parent=5 // pred_fallthru
        _
      %p152 = scmp.lt.s32.totalorder %s13, 2
      // Predicated region
      $region25: #{tpu_custom_call.1} parent=5 // pred_check
        %p153 = pneg %p152
      $region26: #{tpu_custom_call.1} parent=5 // pred_check_branch
        %155 = sbr.rel (%p153) target = $region28
      $region27: #{tpu_custom_call.1} parent=5 // pred_region
        // Predicated region
        $region29: #{tpu_custom_call.1} parent=27 // pred_check
          %p156 = pneg %p33
        $region30: #{tpu_custom_call.1} parent=27 // pred_check_branch
          %158 = sbr.rel (%p156) target = $region32
        $region31: #{tpu_custom_call.1} parent=27 // pred_region
          %p159 = scmp.lt.s32.totalorder %s13, 1
          %s160 = scalar_select %p159, %s13, 1
          %s161 = smul.addr %s160, 8
          %s162 = scalar_lea.vmem %s0, %s161
        $region32: #{tpu_custom_call.1} parent=27 // pred_fallthru
          _
      $region28: #{tpu_custom_call.1} parent=5 // pred_fallthru
        _
      %p163 = scmp.le.s32.totalorder 1, %s13
      %p164 = scmp.lt.s32.totalorder %s13, 3
      %p165 = pnand %p163, %p164
      %p166 = pneg %p165
      // Predicated region
      $region33: #{tpu_custom_call.1} parent=5 // pred_check
        _
      $region34: #{tpu_custom_call.1} parent=5 // pred_check_branch
        %168 = sbr.rel (%p165) target = $region36
      $region35: #{tpu_custom_call.1} parent=5 // pred_region
        %s169 = ssub.s32 %s13, 1
        %p170 = scmp.lt.s32.totalorder %s18, 1
        %s171 = scalar_select %p170, %s18, 1
        %s172 = smul.addr %s171, 8
        %s173 = scalar_lea.vmem %s0, %s172
        %p174 = pneg %p39
        %p175 = pneg %p36
        %p176 = pneg %p60
        %p177 = pneg %p57
        %p178 = pneg %p81
        %p179 = pneg %p78
        %p180 = pneg %p102
        %p181 = pneg %p99
        %p182 = pneg %p128
        %p183 = pneg %p125
        %s184 = sand.u32 %s115, 1
        %s185 = scalar_lea.sflag [#allocation3], %s184
        %s186 = sand.u32 %s115, 1
        %s187 = smul.addr %s186, 16
        %s188 = scalar_lea.vmem [#allocation2], %s187
        %p189 = scmp.lt.s32.totalorder %s18, 1
        %s190 = scalar_select %p189, %s18, 1
        %s191 = smul.addr %s190, 8
        %s192 = scalar_lea.vmem %s0, %s191
        %v193 = vld [vmem:[%s192] sm:$0xff]
        %v194 = vld [vmem:[%s1] sm:$0xff]
        %v195 = vld [vmem:[%s1 + $0x8] sm:$0xff]
        %s196 = scalar_lea.vmem %s1, 16
        %v197 = vld [vmem:[%s196] sm:$0xff]
        %v198 = vld [vmem:[%s196 + $0x8] sm:$0xff]
        %200 = vrot.lane.b32.xlu0 %v193, 127
        %v201 = vpop.permute.xlu0 %200
        %vm203 = vcmask 64512
        %v205 = vsel %vm203, %v197, 0
        %v208 = vsel %vm203, %v198, 0
        %210 = vmatprep.subr.mxu0 0.0
        %211 = vmatpush1.msra.mxu0 0.0
        %212 = vmatprep.subr.mxu0 0.0
        %213 = vmatpush1.msra.mxu0 0.0
        %214 = vmatprep.subr.mxu0 0.0
        %215 = vmatpush1.msra.mxu0 0.0
        %216 = vmatprep.subr.mxu0 0.0
        %217 = vmatpush1.msra.mxu0 0.0
        %218 = vmatprep.subr.mxu0 0.0
        %219 = vmatpush1.msra.mxu0 0.0
        %220 = vmatprep.subr.mxu0 0.0
        %221 = vmatpush1.msra.mxu0 0.0
        %222 = vmatprep.subr.mxu0 0.0
        %223 = vmatpush1.msra.mxu0 0.0
        %224 = vmatprep.subr.mxu0 0.0
        %225 = vmatpush1.msra.mxu0 0.0
        %226 = vmatprep.subr.mxu0 0.0
        %227 = vmatpush1.msra.mxu0 0.0
        %228 = vmatprep.subr.mxu0 0.0
        %229 = vmatpush1.msra.mxu0 0.0
        %230 = vmatprep.subr.mxu0 0.0
        %231 = vmatpush1.msra.mxu0 0.0
        %232 = vmatprep.subr.mxu0 0.0
        %233 = vmatpush1.msra.mxu0 0.0
        %234 = vmatprep.subr.mxu0 0.0
        %235 = vmatpush1.msra.mxu0 0.0
        %236 = vmatprep.subr.mxu0 0.0
        %237 = vmatpush1.msra.mxu0 0.0
        %238 = vmatprep.subr.mxu0 0.0
        %239 = vmatpush1.msra.mxu0 0.0
        %240 = vmatprep.subr.mxu0 0.0
        %241 = vmatpush1.msra.mxu0 %v201
        %242 = vmatprep.subr.mxu0 0.0
        %243 = vmatpush2.msra.mxu0 0.0
        %244 = vmatprep.subr.mxu0 0.0
        %245 = vmatpush2.msra.mxu0 0.0
        %246 = vmatprep.subr.mxu0 0.0
        %247 = vmatpush2.msra.mxu0 0.0
        %248 = vmatprep.subr.mxu0 0.0
        %249 = vmatpush2.msra.mxu0 0.0
        %250 = vmatprep.subr.mxu0 0.0
        %251 = vmatpush2.msra.mxu0 0.0
        %252 = vmatprep.subr.mxu0 0.0
        %253 = vmatpush2.msra.mxu0 0.0
        %254 = vmatprep.subr.mxu0 0.0
        %255 = vmatpush2.msra.mxu0 0.0
        %256 = vmatprep.subr.mxu0 0.0
        %257 = vmatpush2.msra.mxu0 0.0
        %258 = vmatprep.subr.mxu0 0.0
        %259 = vmatpush2.msra.mxu0 0.0
        %260 = vmatprep.subr.mxu0 0.0
        %261 = vmatpush2.msra.mxu0 0.0
        %262 = vmatprep.subr.mxu0 0.0
        %263 = vmatpush2.msra.mxu0 0.0
        %264 = vmatprep.subr.mxu0 0.0
        %265 = vmatpush2.msra.mxu0 0.0
        %266 = vmatprep.subr.mxu0 0.0
        %267 = vmatpush2.msra.mxu0 0.0
        %268 = vmatprep.subr.mxu0 0.0
        %269 = vmatpush2.msra.mxu0 0.0
        %270 = vmatprep.subr.mxu0 0.0
        %271 = vmatpush2.msra.mxu0 0.0
        %272 = vmatprep.subr.mxu0 0.0
        %273 = vmatpush2.msra.mxu0 0.0
        %274 = vmatprep.mubr.f32.mxu0 0.0
        %275 = vmatmul.mubr.f32.gmra.mxu0 %v205
        %v276 = vpop.f32.mrf.mxu0
        %v277 = vadd.f32 0.0, %v276
        %v278 = vpop.f32.mrf.mxu0
        %279 = vmatprep.mubr.f32.mxu0 0.0
        %280 = vmatmul.mubr.f32.gmra.mxu0 %v208
        %v281 = vpop.f32.mrf.mxu0
        %v282 = vadd.f32 0.0, %v281
        %v283 = vpop.f32.mrf.mxu0
        %284 = vdwg.mxu0
        %v286 = vsel %vm203, %v194, 0
        %v289 = vsel %vm203, %v195, 0
        %291 = vmatprep.subr.mxu0 0.0
        %292 = vmatpush1.msra.mxu0 0.0
        %293 = vmatprep.subr.mxu0 0.0
        %294 = vmatpush1.msra.mxu0 0.0
        %295 = vmatprep.subr.mxu0 0.0
        %296 = vmatpush1.msra.mxu0 0.0
        %297 = vmatprep.subr.mxu0 0.0
        %298 = vmatpush1.msra.mxu0 0.0
        %299 = vmatprep.subr.mxu0 0.0
        %300 = vmatpush1.msra.mxu0 0.0
        %301 = vmatprep.subr.mxu0 0.0
        %302 = vmatpush1.msra.mxu0 0.0
        %303 = vmatprep.subr.mxu0 0.0
        %304 = vmatpush1.msra.mxu0 0.0
        %305 = vmatprep.subr.mxu0 0.0
        %306 = vmatpush1.msra.mxu0 0.0
        %307 = vmatprep.subr.mxu0 0.0
        %308 = vmatpush1.msra.mxu0 0.0
        %309 = vmatprep.subr.mxu0 0.0
        %310 = vmatpush1.msra.mxu0 0.0
        %311 = vmatprep.subr.mxu0 0.0
        %312 = vmatpush1.msra.mxu0 0.0
        %313 = vmatprep.subr.mxu0 0.0
        %314 = vmatpush1.msra.mxu0 0.0
        %315 = vmatprep.subr.mxu0 0.0
        %316 = vmatpush1.msra.mxu0 0.0
        %317 = vmatprep.subr.mxu0 0.0
        %318 = vmatpush1.msra.mxu0 0.0
        %319 = vmatprep.subr.mxu0 0.0
        %320 = vmatpush1.msra.mxu0 0.0
        %321 = vmatprep.subr.mxu0 0.0
        %322 = vmatpush1.msra.mxu0 %v193
        %323 = vmatprep.subr.mxu0 0.0
        %324 = vmatpush2.msra.mxu0 0.0
        %325 = vmatprep.subr.mxu0 0.0
        %326 = vmatpush2.msra.mxu0 0.0
        %327 = vmatprep.subr.mxu0 0.0
        %328 = vmatpush2.msra.mxu0 0.0
        %329 = vmatprep.subr.mxu0 0.0
        %330 = vmatpush2.msra.mxu0 0.0
        %331 = vmatprep.subr.mxu0 0.0
        %332 = vmatpush2.msra.mxu0 0.0
        %333 = vmatprep.subr.mxu0 0.0
        %334 = vmatpush2.msra.mxu0 0.0
        %335 = vmatprep.subr.mxu0 0.0
        %336 = vmatpush2.msra.mxu0 0.0
        %337 = vmatprep.subr.mxu0 0.0
        %338 = vmatpush2.msra.mxu0 0.0
        %339 = vmatprep.subr.mxu0 0.0
        %340 = vmatpush2.msra.mxu0 0.0
        %341 = vmatprep.subr.mxu0 0.0
        %342 = vmatpush2.msra.mxu0 0.0
        %343 = vmatprep.subr.mxu0 0.0
        %344 = vmatpush2.msra.mxu0 0.0
        %345 = vmatprep.subr.mxu0 0.0
        %346 = vmatpush2.msra.mxu0 0.0
        %347 = vmatprep.subr.mxu0 0.0
        %348 = vmatpush2.msra.mxu0 0.0
        %349 = vmatprep.subr.mxu0 0.0
        %350 = vmatpush2.msra.mxu0 0.0
        %351 = vmatprep.subr.mxu0 0.0
        %352 = vmatpush2.msra.mxu0 0.0
        %353 = vmatprep.subr.mxu0 0.0
        %354 = vmatpush2.msra.mxu0 0.0
        %355 = vmatprep.mubr.f32.mxu0 0.0
        %356 = vmatmul.mubr.f32.gmra.mxu0 %v286
        %v357 = vpop.f32.mrf.mxu0
        %v358 = vadd.f32 %v277, %v357
        %v359 = vpop.f32.mrf.mxu0
        %360 = vmatprep.mubr.f32.mxu0 0.0
        %361 = vmatmul.mubr.f32.gmra.mxu0 %v289
        %v362 = vpop.f32.mrf.mxu0
        %v363 = vadd.f32 %v282, %v362
        %v364 = vpop.f32.mrf.mxu0
        %365 = vdwg.mxu0
        %s366 = scalar_lea.vmem %s1, 32
        %v367 = vld [vmem:[%s366] sm:$0xff]
        %v368 = vld [vmem:[%s366 + $0x8] sm:$0xff]
        %369 = vrot.lane.b32.xlu0 %v193, 126
        %v370 = vpop.permute.xlu0 %369
        %v373 = vsel %vm203, %v367, 0
        %v376 = vsel %vm203, %v368, 0
        %378 = vmatprep.subr.mxu0 0.0
        %379 = vmatpush1.msra.mxu0 0.0
        %380 = vmatprep.subr.mxu0 0.0
        %381 = vmatpush1.msra.mxu0 0.0
        %382 = vmatprep.subr.mxu0 0.0
        %383 = vmatpush1.msra.mxu0 0.0
        %384 = vmatprep.subr.mxu0 0.0
        %385 = vmatpush1.msra.mxu0 0.0
        %386 = vmatprep.subr.mxu0 0.0
        %387 = vmatpush1.msra.mxu0 0.0
        %388 = vmatprep.subr.mxu0 0.0
        %389 = vmatpush1.msra.mxu0 0.0
        %390 = vmatprep.subr.mxu0 0.0
        %391 = vmatpush1.msra.mxu0 0.0
        %392 = vmatprep.subr.mxu0 0.0
        %393 = vmatpush1.msra.mxu0 0.0
        %394 = vmatprep.subr.mxu0 0.0
        %395 = vmatpush1.msra.mxu0 0.0
        %396 = vmatprep.subr.mxu0 0.0
        %397 = vmatpush1.msra.mxu0 0.0
        %398 = vmatprep.subr.mxu0 0.0
        %399 = vmatpush1.msra.mxu0 0.0
        %400 = vmatprep.subr.mxu0 0.0
        %401 = vmatpush1.msra.mxu0 0.0
        %402 = vmatprep.subr.mxu0 0.0
        %403 = vmatpush1.msra.mxu0 0.0
        %404 = vmatprep.subr.mxu0 0.0
        %405 = vmatpush1.msra.mxu0 0.0
        %406 = vmatprep.subr.mxu0 0.0
        %407 = vmatpush1.msra.mxu0 0.0
        %408 = vmatprep.subr.mxu0 0.0
        %409 = vmatpush1.msra.mxu0 %v370
        %410 = vmatprep.subr.mxu0 0.0
        %411 = vmatpush2.msra.mxu0 0.0
        %412 = vmatprep.subr.mxu0 0.0
        %413 = vmatpush2.msra.mxu0 0.0
        %414 = vmatprep.subr.mxu0 0.0
        %415 = vmatpush2.msra.mxu0 0.0
        %416 = vmatprep.subr.mxu0 0.0
        %417 = vmatpush2.msra.mxu0 0.0
        %418 = vmatprep.subr.mxu0 0.0
        %419 = vmatpush2.msra.mxu0 0.0
        %420 = vmatprep.subr.mxu0 0.0
        %421 = vmatpush2.msra.mxu0 0.0
        %422 = vmatprep.subr.mxu0 0.0
        %423 = vmatpush2.msra.mxu0 0.0
        %424 = vmatprep.subr.mxu0 0.0
        %425 = vmatpush2.msra.mxu0 0.0
        %426 = vmatprep.subr.mxu0 0.0
        %427 = vmatpush2.msra.mxu0 0.0
        %428 = vmatprep.subr.mxu0 0.0
        %429 = vmatpush2.msra.mxu0 0.0
        %430 = vmatprep.subr.mxu0 0.0
        %431 = vmatpush2.msra.mxu0 0.0
        %432 = vmatprep.subr.mxu0 0.0
        %433 = vmatpush2.msra.mxu0 0.0
        %434 = vmatprep.subr.mxu0 0.0
        %435 = vmatpush2.msra.mxu0 0.0
        %436 = vmatprep.subr.mxu0 0.0
        %437 = vmatpush2.msra.mxu0 0.0
        %438 = vmatprep.subr.mxu0 0.0
        %439 = vmatpush2.msra.mxu0 0.0
        %440 = vmatprep.subr.mxu0 0.0
        %441 = vmatpush2.msra.mxu0 0.0
        %442 = vmatprep.mubr.f32.mxu0 0.0
        %443 = vmatmul.mubr.f32.gmra.mxu0 %v373
        %v444 = vpop.f32.mrf.mxu0
        %v445 = vadd.f32 0.0, %v444
        %v446 = vpop.f32.mrf.mxu0
        %447 = vmatprep.mubr.f32.mxu0 0.0
        %448 = vmatmul.mubr.f32.gmra.mxu0 %v376
        %v449 = vpop.f32.mrf.mxu0
        %v450 = vadd.f32 0.0, %v449
        %v451 = vpop.f32.mrf.mxu0
        %452 = vdwg.mxu0
        %v453 = vadd.f32 %v358, %v445
        %v454 = vadd.f32 %v363, %v450
        %v455 = vld [vmem:[%s2] sm:$0xff]
        %v456 = vld [vmem:[%s2 + $0x8] sm:$0xff]
        %458 = vset.pattern.permute.xlu0 0
        %459 = vperm.xlu0 %458, %v455
        %v460 = vpop.permute.xlu0 %459
        %463 = vset.pattern.permute.xlu0 0
        %464 = vperm.xlu0 %463, %v456
        %v465 = vpop.permute.xlu0 %464
        %v467 = vmul.f32 %v453, %v460
        %v468 = vmul.f32 %v454, %v465
        %v469 = vld [vmem:[%s3] sm:$0xff]
        %v470 = vld [vmem:[%s3 + $0x8] sm:$0xff]
        %472 = vset.pattern.permute.xlu0 0
        %473 = vperm.xlu0 %472, %v469
        %v474 = vpop.permute.xlu0 %473
        %477 = vset.pattern.permute.xlu0 0
        %478 = vperm.xlu0 %477, %v470
        %v479 = vpop.permute.xlu0 %478
        %v481 = vadd.f32 %v467, %v474
        %v482 = vadd.f32 %v468, %v479
        %v483 = vmax.f32 %v481, 0.0
        %v484 = vmax.f32 %v482, 0.0
        %vm485 = vcmask 130048
        %486 = vst.msk [vmem:[%s188] sm:$0xff] %vm485, %v483
        %487 = vst.msk [vmem:[%s188 + $0x8] sm:$0xff] %vm485, %v484
        %s488 = sand.u32 %s115, 1
        %s489 = scalar_lea.sflag [#allocation3], %s488
        %s490 = sand.u32 %s115, 1
        %s491 = smul.addr %s490, 16
        %s492 = scalar_lea.vmem [#allocation2], %s491
        // Predicated region
        $region37: #{tpu_custom_call.1} parent=35 // pred_check
          %p493 = pneg %p125
        $region38: #{tpu_custom_call.1} parent=35 // pred_check_branch
          %495 = sbr.rel (%p493) target = $region40
        $region39: #{tpu_custom_call.1} parent=35 // pred_region
          %s497 = ssub.s32 256, 256
          %498 = vsyncadd %s489, %s497
          %s499 = smul.addr %s18, 2
          %s500 = smul.addr %s499, 128
          %s501 = scalar_lea.hbm %s4, %s500
          %s502 = sshll.u32 %s492, 4
          %s503 = int_to_ptr.vmem [resolvable:$true] %s502
          %508 = dma.vmem_to_hbm [thread:$0]  %s503, 256, %s501, %s489, 128, 128, 8
        $region40: #{tpu_custom_call.1} parent=35 // pred_fallthru
          _
      $region36: #{tpu_custom_call.1} parent=5 // pred_fallthru
        _
      %p509 = scmp.le.s32.totalorder 2, %s13
      // Predicated region
      $region41: #{tpu_custom_call.1} parent=5 // pred_check
        %p510 = pneg %p509
      $region42: #{tpu_custom_call.1} parent=5 // pred_check_branch
        %512 = sbr.rel (%p510) target = $region44
      $region43: #{tpu_custom_call.1} parent=5 // pred_region
        %s513 = ssub.s32 %s13, 2
        // Predicated region
        $region45: #{tpu_custom_call.1} parent=43 // pred_check
          %p514 = pneg %p131
        $region46: #{tpu_custom_call.1} parent=43 // pred_check_branch
          %516 = sbr.rel (%p514) target = $region48
        $region47: #{tpu_custom_call.1} parent=43 // pred_region
          %s517 = sand.u32 %s116, 1
          %s518 = scalar_lea.sflag [#allocation3], %s517
          %s519 = sand.u32 %s116, 1
          %s520 = smul.addr %s519, 16
          %s521 = scalar_lea.vmem [#allocation2], %s520
          %522 = dma.done %s518, 256
        $region48: #{tpu_custom_call.1} parent=43 // pred_fallthru
          _
      $region44: #{tpu_custom_call.1} parent=5 // pred_fallthru
        _
    $region6: #{tpu_custom_call.1} parent=1 // loop_footer
      %s17 = sadd.s32 1, %s13
    $region7: #{tpu_custom_call.1} parent=1 // loop_footer_branch
      %12 = sbr.rel target = $region3
    $region8: #{tpu_custom_call.1} parent=1 // loop_exit
      _
    %523 = vsyncpa [#allocation3], 1
    %s524 = scalar_lea.sflag [#allocation3], 1
    %525 = vsyncpa %s524, 1

</llo_original>
